<compile_context>
chip_gen: v7x
topology: tpu7x:2x2x1
jax: 0.10.0
libtpu: 0.0.40
codegen_flags: <defaults>
</compile_context>

<pallas_src>
import functools

import jax
import jax.numpy as jnp
from jax.experimental import pallas as pl
from jax.experimental.pallas import tpu as pltpu


def _round_up(x, m):
    return ((x + m - 1) // m) * m


def _vmem_capacity_bytes():
    """Generation-aware VMEM capacity (64 MiB on v7x, 128 MiB on v5e/v6e)."""
    try:
        return int(pltpu.get_tpu_info().vmem_capacity_bytes)
    except Exception:
        return 64 * 1024 * 1024   # conservative fallback (v7x per-core VMEM)


def _entropy_contrastive_kernel(q_ref, p_ref, n_ref, neg_ref, out_ref,
                                *, B, TB, margin, max_dist):
    i = pl.program_id(0)

    q = q_ref[...]        # (TB, 1, D)  -- broadcasts along the sublane axis
    p = p_ref[...]        # (TB, P, D)
    n = n_ref[...]        # (TB, N, D)
    neg = neg_ref[...]    # (TB, N) float 0/1 mask, lane-major

    # Two q*(.)-reduces on the VPU (kernel is DMA-bound, not FLOP-bound; the MXU
    # would add nothing).  D sits on the lane axis, P/N land on lanes in the
    # results so the whole epilogue stays in a handful of lane-dense vregs.
    sp = jnp.sum(q * p, axis=-1)                                 # (TB, P)
    sn = jnp.sum(q * n, axis=-1)                                 # (TB, N)

    # ---- contrastive term ----
    term1 = jnp.mean(1.0 - sp, axis=-1, keepdims=True)           # (TB, 1)
    # NOTE: the reference computes within_margin from sn AFTER the in-place
    # `sim_an[~is_neg] = -1000` fill; using the raw sn here is equivalent
    # because wm is always multiplied by `neg` downstream (masked rows give 0).
    wm = (sn > margin).astype(jnp.float32)                       # (TB, N)
    num = jnp.sum(sn * neg * wm, axis=-1, keepdims=True)         # (TB, 1)
    # keep the element-wise +1e-5 (adds N*1e-5 in total) to match torch exactly
    den = jnp.sum(neg * wm + 1e-5, axis=-1, keepdims=True)       # (TB, 1)
    lc_b = term1 + num / den                                     # (TB, 1)

    # ---- repulsion term (repulsion_loss, max_dist=0.1) ----
    sn_masked = jnp.where(neg > 0.0, sn, -1000.0)                # sim_an[~is_neg] = -1000
    dist_p = (1.0 - jnp.max(sp, axis=-1, keepdims=True)) * 0.5   # (TB, 1)
    dist_n = (1.0 - jnp.max(sn_masked, axis=-1, keepdims=True)) * 0.5
    dist = jnp.where(dist_p < dist_n, dist_p, dist_n) + 1e-5
    dist = jnp.where(dist > max_dist, 1.0, dist)
    rep_b = -jnp.log(dist)                                       # (TB, 1)

    if B % TB != 0:
        # Static branch: only emitted when a partial trailing tile exists.  The
        # padded rows contain arbitrary HBM data and can yield NaN/Inf; rely on
        # jnp.where being a true select (not a multiply-mask) to drop them.
        row = jax.lax.broadcasted_iota(jnp.int32, (TB, 1), 0) + i * TB
        valid = row < B
        lc_b = jnp.where(valid, lc_b, 0.0)
        rep_b = jnp.where(valid, rep_b, 0.0)

    lc_tile = jnp.sum(lc_b, axis=0, keepdims=True)               # (1, 1)
    rep_tile = jnp.sum(rep_b, axis=0, keepdims=True)             # (1, 1)

    # Lane-dense (1, 8, 128) output block: lane 0 carries the l_cont partial
    # sum, lane 1 the l_rep partial sum, remaining lanes are zero padding.
    lane = jax.lax.broadcasted_iota(jnp.int32, (1, 8, 128), 2)
    out_ref[...] = jnp.where(lane == 0, lc_tile,
                             jnp.where(lane == 1, rep_tile, 0.0))


def entropy_contrastive_loss(q, p, n, is_neg, *, margin, alpha, max_dist=0.1,
                             tb=None):
    """Pallas TPU implementation of EntropyContrastiveLoss.forward."""
    B, P, D = p.shape
    N = n.shape[1]
    assert q.shape == (B, 1, D) and n.shape == (B, N, D) and is_neg.shape == (B, N)

    q = q.astype(jnp.float32)
    p = p.astype(jnp.float32)
    n = n.astype(jnp.float32)
    neg_f = is_neg.astype(jnp.float32)   # tiny (<3% of traffic); see header note

    # ---- generation-aware scoped-VMEM limit ----
    vmem_cap = _vmem_capacity_bytes()
    # v7x (64 MiB)  -> 48 MiB scoped limit; v5e/v6e (128 MiB) -> 96 MiB.
    vmem_limit = int(min(max((vmem_cap * 3) // 4, 32 * 1024 * 1024),
                         96 * 1024 * 1024))

    # ---- padding-aware per-batch-element VMEM footprint ----
    d_pad = _round_up(D, 128)
    in_bytes = (
        _round_up(1, 8) * d_pad * 4      # q block row: (1, D) pads to (8, 128k)
        + _round_up(P, 8) * d_pad * 4    # p block row
        + _round_up(N, 8) * d_pad * 4    # n block row
        + _round_up(N, 128) * 4          # f32 mask row (lane-padded)
    )
    # q*p and q*n product temporaries materialized by the in-kernel reduces.
    tmp_bytes = (_round_up(P, 8) + _round_up(N, 8)) * d_pad * 4

    if tb is None:
        budget = int(vmem_limit * 0.8)                       # headroom for out + temps
        tb = max(1, budget // (2 * in_bytes + tmp_bytes))    # x2: input double-buffering
        # Keep >=2 (ideally ~4) grid tiles so v7x's two TensorCores both get
        # work and DMA/compute overlap across steps on all generations.
        tb = min(tb, max(8, int(pl.cdiv(B, 4))))
    tb = int(max(1, min(tb, B)))
    if tb < B and tb % 8 != 0:
        # The 2-D mask block (tb, N) needs its sublane dim to be a multiple of
        # 8 unless it spans the whole batch.
        tb = min(B, max(8, (tb // 8) * 8))
    if tb >= B:
        tb = B
    num_tiles = int(pl.cdiv(B, tb))

    kernel = functools.partial(
        _entropy_contrastive_kernel,
        B=B, TB=tb, margin=float(margin), max_dist=float(max_dist))

    cost = pl.CostEstimate(
        flops=2 * B * (P + N) * D,                     # q.p and q.n multiply-adds
        transcendentals=B,                             # one log per batch element
        bytes_accessed=(B * (1 + P + N) * D + B * N) * 4 + num_tiles * 8 * 128 * 4,
    )

    partials = pl.pallas_call(
        kernel,
        out_shape=jax.ShapeDtypeStruct((num_tiles, 8, 128), jnp.float32),
        grid_spec=pltpu.PrefetchScalarGridSpec(
            num_scalar_prefetch=0,
            grid=(num_tiles,),
            in_specs=[
                pl.BlockSpec((tb, 1, D), lambda i: (i, 0, 0)),    # q
                pl.BlockSpec((tb, P, D), lambda i: (i, 0, 0)),    # p
                pl.BlockSpec((tb, N, D), lambda i: (i, 0, 0)),    # n
                pl.BlockSpec((tb, N), lambda i: (i, 0)),          # is_neg mask
            ],
            out_specs=pl.BlockSpec((1, 8, 128), lambda i: (i, 0, 0)),
        ),
        compiler_params=pltpu.CompilerParams(
            dimension_semantics=("parallel",),      # independent tiles: v7x 2-TC sharding
            vmem_limit_bytes=vmem_limit),
        cost_estimate=cost,
    )(q, p, n, neg_f)

    # Tiny final reduction in the wrapper: batch mean + alpha scaling.
    l_cont = jnp.sum(partials[:, 0, 0]) / B
    l_rep = jnp.sum(partials[:, 0, 1]) / B * alpha
    loss = l_cont + l_rep
    return loss, {"l_cont": l_cont, "l_rep": l_rep}


def _reference(q, p, n, is_neg, margin, alpha, max_dist=0.1):
    """Pure-JAX transcription of the PyTorch module, for sanity checking."""
    sp = jnp.sum(q * p, axis=-1)                       # (B, P)
    sn = jnp.sum(q * n, axis=-1)                       # (B, N)
    sn_m = jnp.where(is_neg, sn, -1000.0)              # in-place mask, functional
    dist_p = (1.0 - sp.max(-1)) / 2
    dist_n = (1.0 - sn_m.max(-1)) / 2
    dist = jnp.where(dist_p < dist_n, dist_p, dist_n) + 1e-5
    dist = jnp.where(dist > max_dist, 1.0, dist)
    l_rep = -jnp.log(dist).mean() * alpha
    isn = is_neg.astype(jnp.float32)
    wm = (sn_m > margin).astype(jnp.float32)
    l_c = (1.0 - sp).mean(-1) + (sn_m * isn * wm).sum(-1) / (isn * wm + 1e-5).sum(-1)
    l_c = l_c.mean()
    return l_c + l_rep, {"l_cont": l_c, "l_rep": l_rep}


def _check(got, ref):
    loss, losses = got
    ref_total, ref_losses = ref
    loss = jax.block_until_ready(loss)
    assert jnp.allclose(loss, ref_total, atol=1e-5, rtol=1e-5), (loss, ref_total)
    assert jnp.allclose(losses["l_cont"], ref_losses["l_cont"], atol=1e-5, rtol=1e-5)
    assert jnp.allclose(losses["l_rep"], ref_losses["l_rep"], atol=1e-5, rtol=1e-5)


if __name__ == "__main__":
    # Deterministic, small shapes: B=16 queries, P=2 positives, N=8 negatives, D=32.
    key = jax.random.PRNGKey(0)
    B, P, N, D = 16, 2, 8, 32
    kq, kp, kn, km = jax.random.split(key, 4)
    q = jax.random.normal(kq, (B, 1, D), jnp.float32)
    p = jax.random.normal(kp, (B, P, D), jnp.float32)
    n = jax.random.normal(kn, (B, N, D), jnp.float32)
    # L2-normalize so the dot products are cosine similarities in [-1, 1].
    q = q / jnp.linalg.norm(q, axis=-1, keepdims=True)
    p = p / jnp.linalg.norm(p, axis=-1, keepdims=True)
    n = n / jnp.linalg.norm(n, axis=-1, keepdims=True)
    is_neg = jax.random.bernoulli(km, 0.7, (B, N))

    margin, alpha = 0.2, 1.0   # module __init__ hyper-parameters (deterministic)

    # (a) explicit tile size: 2 full batch tiles of 8 on the parallel grid axis.
    ref_a = _reference(q, p, n, is_neg, margin, alpha)
    _check(entropy_contrastive_loss(q, p, n, is_neg, margin=margin, alpha=alpha, tb=8),
           ref_a)

    # (b) default auto-sized tiles (generation-aware, padding-aware sizing;
    #     the >=2-tile cap also yields 2 tiles of 8 here).
    _check(entropy_contrastive_loss(q, p, n, is_neg, margin=margin, alpha=alpha),
           ref_a)

    # (c) partial trailing tile: B=12 with tb auto (=8) exercises the padded-row
    #     select path.
    q12, p12, n12, m12 = q[:12], p[:12], n[:12], is_neg[:12]
    ref_c = _reference(q12, p12, n12, m12, margin, alpha)
    _check(entropy_contrastive_loss(q12, p12, n12, m12, margin=margin, alpha=alpha),
           ref_c)

    print("KERNEL_OK")
</pallas_src>

<mosaic_0001>
module attributes {stable_mosaic.version = 11 : i64} {
  func.func @_entropy_contrastive_kernel(%arg0: i32, %arg1: memref<8x1x32xf32, #tpu.memory_space<vmem>>, %arg2: memref<8x2x32xf32, #tpu.memory_space<vmem>>, %arg3: memref<8x8x32xf32, #tpu.memory_space<vmem>>, %arg4: memref<8x8xf32, #tpu.memory_space<vmem>>, %arg5: memref<1x8x128xf32, #tpu.memory_space<vmem>>) attributes {dimension_semantics = [#tpu.dimension_semantics<parallel>], iteration_bounds = array<i64: 2>, scalar_prefetch = 0 : i64, scratch_operands = 0 : i64, tpu.core_type = #tpu.core_type<tc>, window_params = [{transform_indices = @transform_0, window_bounds = array<i64: 8, 1, 32>}, {transform_indices = @transform_1, window_bounds = array<i64: 8, 2, 32>}, {transform_indices = @transform_2, window_bounds = array<i64: 8, 8, 32>}, {transform_indices = @transform_3, window_bounds = array<i64: 8, 8>}, {transform_indices = @transform_4, window_bounds = array<i64: 1, 8, 128>}]} {
    %c0 = arith.constant 0 : index
    %c0_0 = arith.constant 0 : index
    %c0_1 = arith.constant 0 : index
    %0 = vector.load %arg1[%c0, %c0_0, %c0_1] : memref<8x1x32xf32, #tpu.memory_space<vmem>>, vector<8x1x32xf32>
    %c0_2 = arith.constant 0 : index
    %c0_3 = arith.constant 0 : index
    %c0_4 = arith.constant 0 : index
    %1 = vector.load %arg2[%c0_2, %c0_3, %c0_4] : memref<8x2x32xf32, #tpu.memory_space<vmem>>, vector<8x2x32xf32>
    %c0_5 = arith.constant 0 : index
    %c0_6 = arith.constant 0 : index
    %c0_7 = arith.constant 0 : index
    %2 = vector.load %arg3[%c0_5, %c0_6, %c0_7] : memref<8x8x32xf32, #tpu.memory_space<vmem>>, vector<8x8x32xf32>
    %c0_8 = arith.constant 0 : index
    %c0_9 = arith.constant 0 : index
    %3 = vector.load %arg4[%c0_8, %c0_9] : memref<8x8xf32, #tpu.memory_space<vmem>>, vector<8x8xf32>
    %4 = vector.broadcast %0 : vector<8x1x32xf32> to vector<8x2x32xf32>
    %5 = arith.mulf %4, %1 : vector<8x2x32xf32>
    %cst = arith.constant dense<0.000000e+00> : vector<8x2xf32>
    %6 = vector.multi_reduction <add>, %5, %cst [2] : vector<8x2x32xf32> to vector<8x2xf32>
    %7 = vector.broadcast %0 : vector<8x1x32xf32> to vector<8x8x32xf32>
    %8 = arith.mulf %7, %2 : vector<8x8x32xf32>
    %cst_10 = arith.constant dense<0.000000e+00> : vector<8x8xf32>
    %9 = vector.multi_reduction <add>, %8, %cst_10 [2] : vector<8x8x32xf32> to vector<8x8xf32>
    %cst_11 = arith.constant 1.000000e+00 : f32
    %10 = vector.broadcast %cst_11 : f32 to vector<8x2xf32>
    %11 = arith.subf %10, %6 : vector<8x2xf32>
    %cst_12 = arith.constant dense<0.000000e+00> : vector<8xf32>
    %12 = vector.multi_reduction <add>, %11, %cst_12 [1] : vector<8x2xf32> to vector<8xf32>
    %13 = vector.shape_cast %12 : vector<8xf32> to vector<8x1xf32>
    %cst_13 = arith.constant 2.000000e+00 : f32
    %14 = vector.broadcast %cst_13 : f32 to vector<8x1xf32>
    %15 = arith.divf %13, %14 : vector<8x1xf32>
    %cst_14 = arith.constant 2.000000e-01 : f32
    %16 = vector.broadcast %cst_14 : f32 to vector<8x8xf32>
    %17 = arith.cmpf ogt, %9, %16 : vector<8x8xf32>
    %18 = arith.extui %17 : vector<8x8xi1> to vector<8x8xi32>
    %19 = arith.sitofp %18 : vector<8x8xi32> to vector<8x8xf32>
    %20 = arith.mulf %9, %3 : vector<8x8xf32>
    %21 = arith.mulf %20, %19 : vector<8x8xf32>
    %cst_15 = arith.constant dense<0.000000e+00> : vector<8xf32>
    %22 = vector.multi_reduction <add>, %21, %cst_15 [1] : vector<8x8xf32> to vector<8xf32>
    %23 = vector.shape_cast %22 : vector<8xf32> to vector<8x1xf32>
    %24 = arith.mulf %3, %19 : vector<8x8xf32>
    %cst_16 = arith.constant 9.99999974E-6 : f32
    %25 = vector.broadcast %cst_16 : f32 to vector<8x8xf32>
    %26 = arith.addf %24, %25 : vector<8x8xf32>
    %cst_17 = arith.constant dense<0.000000e+00> : vector<8xf32>
    %27 = vector.multi_reduction <add>, %26, %cst_17 [1] : vector<8x8xf32> to vector<8xf32>
    %28 = vector.shape_cast %27 : vector<8xf32> to vector<8x1xf32>
    %29 = arith.divf %23, %28 : vector<8x1xf32>
    %30 = arith.addf %15, %29 : vector<8x1xf32>
    %cst_18 = arith.constant 0.000000e+00 : f32
    %31 = vector.broadcast %cst_18 : f32 to vector<8x8xf32>
    %32 = arith.cmpf ogt, %3, %31 : vector<8x8xf32>
    %cst_19 = arith.constant -1.000000e+03 : f32
    %33 = vector.broadcast %cst_19 : f32 to vector<8x8xf32>
    %34 = arith.select %32, %9, %33 : vector<8x8xi1>, vector<8x8xf32>
    %cst_20 = arith.constant dense<0xFF800000> : vector<8xf32>
    %35 = vector.multi_reduction <maximumf>, %6, %cst_20 [1] : vector<8x2xf32> to vector<8xf32>
    %36 = vector.shape_cast %35 : vector<8xf32> to vector<8x1xf32>
    %cst_21 = arith.constant 1.000000e+00 : f32
    %37 = vector.broadcast %cst_21 : f32 to vector<8x1xf32>
    %38 = arith.subf %37, %36 : vector<8x1xf32>
    %cst_22 = arith.constant 5.000000e-01 : f32
    %39 = vector.broadcast %cst_22 : f32 to vector<8x1xf32>
    %40 = arith.mulf %38, %39 : vector<8x1xf32>
    %cst_23 = arith.constant dense<0xFF800000> : vector<8xf32>
    %41 = vector.multi_reduction <maximumf>, %34, %cst_23 [1] : vector<8x8xf32> to vector<8xf32>
    %42 = vector.shape_cast %41 : vector<8xf32> to vector<8x1xf32>
    %cst_24 = arith.constant 1.000000e+00 : f32
    %43 = vector.broadcast %cst_24 : f32 to vector<8x1xf32>
    %44 = arith.subf %43, %42 : vector<8x1xf32>
    %cst_25 = arith.constant 5.000000e-01 : f32
    %45 = vector.broadcast %cst_25 : f32 to vector<8x1xf32>
    %46 = arith.mulf %44, %45 : vector<8x1xf32>
    %47 = arith.cmpf olt, %40, %46 : vector<8x1xf32>
    %48 = arith.select %47, %40, %46 : vector<8x1xi1>, vector<8x1xf32>
    %cst_26 = arith.constant 9.99999974E-6 : f32
    %49 = vector.broadcast %cst_26 : f32 to vector<8x1xf32>
    %50 = arith.addf %48, %49 : vector<8x1xf32>
    %cst_27 = arith.constant 1.000000e-01 : f32
    %51 = vector.broadcast %cst_27 : f32 to vector<8x1xf32>
    %52 = arith.cmpf ogt, %50, %51 : vector<8x1xf32>
    %cst_28 = arith.constant 1.000000e+00 : f32
    %53 = vector.broadcast %cst_28 : f32 to vector<8x1xf32>
    %54 = arith.select %52, %53, %50 : vector<8x1xi1>, vector<8x1xf32>
    %55 = math.log %54 : vector<8x1xf32>
    %cst_29 = arith.constant 0.000000e+00 : f32
    %56 = vector.broadcast %cst_29 : f32 to vector<8x1xf32>
    %57 = arith.subf %56, %55 : vector<8x1xf32>
    %cst_30 = arith.constant dense<0.000000e+00> : vector<1xf32>
    %58 = vector.multi_reduction <add>, %30, %cst_30 [0] : vector<8x1xf32> to vector<1xf32>
    %59 = vector.shape_cast %58 : vector<1xf32> to vector<1x1xf32>
    %cst_31 = arith.constant dense<0.000000e+00> : vector<1xf32>
    %60 = vector.multi_reduction <add>, %57, %cst_31 [0] : vector<8x1xf32> to vector<1xf32>
    %61 = vector.shape_cast %60 : vector<1xf32> to vector<1x1xf32>
    %62 = tpu.iota {dimensions = array<i32: 2>} : vector<1x8x128xi32>
    %c0_i32 = arith.constant 0 : i32
    %63 = vector.broadcast %c0_i32 : i32 to vector<1x8x128xi32>
    %64 = arith.cmpi eq, %62, %63 : vector<1x8x128xi32>
    %c1_i32 = arith.constant 1 : i32
    %65 = vector.broadcast %c1_i32 : i32 to vector<1x8x128xi32>
    %66 = arith.cmpi eq, %62, %65 : vector<1x8x128xi32>
    %cst_32 = arith.constant 0.000000e+00 : f32
    %67 = vector.shape_cast %61 : vector<1x1xf32> to vector<1x1x1xf32>
    %68 = vector.broadcast %67 : vector<1x1x1xf32> to vector<1x8x128xf32>
    %69 = vector.broadcast %cst_32 : f32 to vector<1x8x128xf32>
    %70 = arith.select %66, %68, %69 : vector<1x8x128xi1>, vector<1x8x128xf32>
    %71 = vector.shape_cast %59 : vector<1x1xf32> to vector<1x1x1xf32>
    %72 = vector.broadcast %71 : vector<1x1x1xf32> to vector<1x8x128xf32>
    %73 = arith.select %64, %72, %70 : vector<1x8x128xi1>, vector<1x8x128xf32>
    %c0_33 = arith.constant 0 : index
    %c0_34 = arith.constant 0 : index
    %c0_35 = arith.constant 0 : index
    %74 = vector.load %arg5[%c0_33, %c0_34, %c0_35] : memref<1x8x128xf32, #tpu.memory_space<vmem>>, vector<1x8x128xf32>
    tpu.vector_store %arg5[%c0_33, %c0_34, %c0_35], %73 {strides = array<i32>} : memref<1x8x128xf32, #tpu.memory_space<vmem>>, vector<1x8x128xf32>,
    return
  }
  func.func @transform_0(%arg0: i32) -> (i32, i32, i32) {
    %c0_i32 = arith.constant 0 : i32
    %c0_i32_0 = arith.constant 0 : i32
    %c0_i32_1 = arith.constant 0 : i32
    return %arg0, %c0_i32, %c0_i32_0 : i32, i32, i32
  }
  func.func @transform_1(%arg0: i32) -> (i32, i32, i32) {
    %c0_i32 = arith.constant 0 : i32
    %c0_i32_0 = arith.constant 0 : i32
    %c0_i32_1 = arith.constant 0 : i32
    return %arg0, %c0_i32, %c0_i32_0 : i32, i32, i32
  }
  func.func @transform_2(%arg0: i32) -> (i32, i32, i32) {
    %c0_i32 = arith.constant 0 : i32
    %c0_i32_0 = arith.constant 0 : i32
    %c0_i32_1 = arith.constant 0 : i32
    return %arg0, %c0_i32, %c0_i32_0 : i32, i32, i32
  }
  func.func @transform_3(%arg0: i32) -> (i32, i32) {
    %c0_i32 = arith.constant 0 : i32
    %c0_i32_0 = arith.constant 0 : i32
    return %arg0, %c0_i32 : i32, i32
  }
  func.func @transform_4(%arg0: i32) -> (i32, i32, i32) {
    %c0_i32 = arith.constant 0 : i32
    %c0_i32_0 = arith.constant 0 : i32
    %c0_i32_1 = arith.constant 0 : i32
    return %arg0, %c0_i32, %c0_i32_0 : i32, i32, i32
  }
}

</mosaic_0001>

<llo_original>
// kernel: tpu_custom_call.1
$region0: #{tpu_custom_call.1}
  #allocation0 [shape = 'u32[]', space=smem, size = 0x4, offset = 0x4, fixed_abs, tag = 'smem constant byte address 0x4 - core index']
  #allocation1 [shape = 'u32[144,128]{1,0:T(1,128)}', space=vmem, size = 0x12000, scoped, tag = 'internal scratch']
  %s0 = inlined_call_operand.vmem [shape: f32[16,1,32], index: 0, kind: input, shape index: {}]
  %s1 = inlined_call_operand.hbm [shape: f32[16,2,32], index: 1, kind: input, shape index: {}]
  %s2 = inlined_call_operand.hbm [shape: f32[16,8,32], index: 2, kind: input, shape index: {}]
  %s3 = inlined_call_operand.vmem [shape: f32[16,8], index: 3, kind: input, shape index: {}]
  %s4 = inlined_call_operand.hbm [shape: f32[2,8,128], index: 4, kind: output, shape index: {}]
  %s5 = sld [smem:[#allocation0]]
  $region57: #{tpu_custom_call.1} parent=0
    _
  %s7 = ssub.s32 1, %s5
  %s8 = scalar_select 0, %s7, %s5
  $region1: #{tpu_custom_call.1} parent=0
    #allocation2 [shape = 'u8[16384]{0}', space=vmem, size = 0x4000, scoped, tag = 'input window, operand 1']
    #allocation3 [shape = 's32[2]{0}', space=sflag, size = 0x8, scoped, tag = 'scoped memory for tpu_custom_call.1']
    #allocation4 [shape = 's32[2]{0}', space=sflag, size = 0x8, scoped, tag = 'scoped memory for tpu_custom_call.1']
    #allocation5 [shape = 'u8[65536]{0}', space=vmem, size = 0x10000, scoped, tag = 'input window, operand 2']
    #allocation6 [shape = 's32[2]{0}', space=sflag, size = 0x8, scoped, tag = 'scoped memory for tpu_custom_call.1']
    #allocation7 [shape = 'u8[8192]{0}', space=vmem, size = 0x2000, scoped, tag = 'output window, operand 0']
    %9 = vsyncpa [#allocation3], 0
    %s10 = scalar_lea.sflag [#allocation3], 1
    %11 = vsyncpa %s10, 0
    %12 = vsyncpa [#allocation6], 0
    %s13 = scalar_lea.sflag [#allocation6], 1
    %14 = vsyncpa %s13, 0
    %15 = vsyncpa [#allocation4], 0
    %s16 = scalar_lea.sflag [#allocation4], 1
    %17 = vsyncpa %s16, 0
    loop: start=0, step=1, limit=4
    $region2: #{tpu_custom_call.1} parent=1 // loop_pre_header
      _
    $region3: #{tpu_custom_call.1} parent=1 // loop_header
      %s19 = sphi 0, %s23
      %p20 = scmp.ge.s32.totalorder %s19, 4
      %s29 = sphi 0, %s31
      %s32 = sphi 0, %s29
      %s33 = sphi 0, %s32
      %s49 = sphi 0, %s33
      %s55 = sphi 0, %s57
      %s58 = sphi 0, %s55
      %s59 = sphi 0, %s58
      %s75 = sphi 0, %s59
      %s81 = sphi 0, %s83
      %s84 = sphi 0, %s81
      %s85 = sphi 0, %s84
      %s101 = sphi 0, %s85
      %s107 = sphi 0, %s109
      %s110 = sphi 0, %s107
      %s111 = sphi 0, %s110
      %s127 = sphi 0, %s111
      %s133 = sphi 0, %s135
      %s136 = sphi 0, %s133
      %s137 = sphi 0, %s136
      %s153 = sphi 0, %s137
    $region4: #{tpu_custom_call.1} parent=1 // loop_header_branch
      %22 = sbr.rel (%p20) target = $region8
    $region5: #{tpu_custom_call.1} parent=1 // loop_body
      %s24 = ssub.s32 %s19, 1
      %s25 = ssub.s32 %s19, 2
      %s26 = sadd.s32 %s19, 1
      %s27 = ssub.s32 %s19, %s26
      %p28 = scmp.eq.s32.totalorder %s27, 0
      %s30 = sadd.s32 %s29, 1
      %s31 = scalar_select %p28, %s29, %s30
      %p34 = pneg %p28
      %p35 = scmp.eq.s32.totalorder %s19, 1
      %p36 = por %p34, %p35
      %p37 = scmp.ne.s32.totalorder %s29, %s32
      %p38 = scmp.eq.s32.totalorder %s19, 0
      %p39 = por %p37, %p38
      %p40 = scmp.ne.s32.totalorder %s29, %s32
      %p41 = scmp.eq.s32.totalorder %s24, 1
      %p42 = por %p40, %p41
      %p43 = scmp.ne.s32.totalorder %s32, %s33
      %p44 = scmp.eq.s32.totalorder %s24, 0
      %p45 = por %p43, %p44
      %p46 = scmp.ne.s32.totalorder %s32, %s33
      %p47 = scmp.eq.s32.totalorder %s25, 1
      %p48 = por %p46, %p47
      %p50 = scmp.ne.s32.totalorder %s33, %s49
      %p51 = scmp.eq.s32.totalorder %s25, 0
      %p52 = por %p50, %p51
      %s53 = ssub.s32 %s19, %s26
      %p54 = scmp.eq.s32.totalorder %s53, 0
      %s56 = sadd.s32 %s55, 1
      %s57 = scalar_select %p54, %s55, %s56
      %p60 = pneg %p54
      %p61 = scmp.eq.s32.totalorder %s19, 1
      %p62 = por %p60, %p61
      %p63 = scmp.ne.s32.totalorder %s55, %s58
      %p64 = scmp.eq.s32.totalorder %s19, 0
      %p65 = por %p63, %p64
      %p66 = scmp.ne.s32.totalorder %s55, %s58
      %p67 = scmp.eq.s32.totalorder %s24, 1
      %p68 = por %p66, %p67
      %p69 = scmp.ne.s32.totalorder %s58, %s59
      %p70 = scmp.eq.s32.totalorder %s24, 0
      %p71 = por %p69, %p70
      %p72 = scmp.ne.s32.totalorder %s58, %s59
      %p73 = scmp.eq.s32.totalorder %s25, 1
      %p74 = por %p72, %p73
      %p76 = scmp.ne.s32.totalorder %s59, %s75
      %p77 = scmp.eq.s32.totalorder %s25, 0
      %p78 = por %p76, %p77
      %s79 = ssub.s32 %s19, %s26
      %p80 = scmp.eq.s32.totalorder %s79, 0
      %s82 = sadd.s32 %s81, 1
      %s83 = scalar_select %p80, %s81, %s82
      %p86 = pneg %p80
      %p87 = scmp.eq.s32.totalorder %s19, 1
      %p88 = por %p86, %p87
      %p89 = scmp.ne.s32.totalorder %s81, %s84
      %p90 = scmp.eq.s32.totalorder %s19, 0
      %p91 = por %p89, %p90
      %p92 = scmp.ne.s32.totalorder %s81, %s84
      %p93 = scmp.eq.s32.totalorder %s24, 1
      %p94 = por %p92, %p93
      %p95 = scmp.ne.s32.totalorder %s84, %s85
      %p96 = scmp.eq.s32.totalorder %s24, 0
      %p97 = por %p95, %p96
      %p98 = scmp.ne.s32.totalorder %s84, %s85
      %p99 = scmp.eq.s32.totalorder %s25, 1
      %p100 = por %p98, %p99
      %p102 = scmp.ne.s32.totalorder %s85, %s101
      %p103 = scmp.eq.s32.totalorder %s25, 0
      %p104 = por %p102, %p103
      %s105 = ssub.s32 %s19, %s26
      %p106 = scmp.eq.s32.totalorder %s105, 0
      %s108 = sadd.s32 %s107, 1
      %s109 = scalar_select %p106, %s107, %s108
      %p112 = pneg %p106
      %p113 = scmp.eq.s32.totalorder %s19, 1
      %p114 = por %p112, %p113
      %p115 = scmp.ne.s32.totalorder %s107, %s110
      %p116 = scmp.eq.s32.totalorder %s19, 0
      %p117 = por %p115, %p116
      %p118 = scmp.ne.s32.totalorder %s107, %s110
      %p119 = scmp.eq.s32.totalorder %s24, 1
      %p120 = por %p118, %p119
      %p121 = scmp.ne.s32.totalorder %s110, %s111
      %p122 = scmp.eq.s32.totalorder %s24, 0
      %p123 = por %p121, %p122
      %p124 = scmp.ne.s32.totalorder %s110, %s111
      %p125 = scmp.eq.s32.totalorder %s25, 1
      %p126 = por %p124, %p125
      %p128 = scmp.ne.s32.totalorder %s111, %s127
      %p129 = scmp.eq.s32.totalorder %s25, 0
      %p130 = por %p128, %p129
      %s131 = ssub.s32 %s19, %s26
      %p132 = scmp.eq.s32.totalorder %s131, 0
      %s134 = sadd.s32 %s133, 1
      %s135 = scalar_select %p132, %s133, %s134
      %p138 = pneg %p132
      %p139 = scmp.eq.s32.totalorder %s19, 1
      %p140 = por %p138, %p139
      %p141 = scmp.ne.s32.totalorder %s133, %s136
      %p142 = scmp.eq.s32.totalorder %s19, 0
      %p143 = por %p141, %p142
      %p144 = scmp.ne.s32.totalorder %s133, %s136
      %p145 = scmp.eq.s32.totalorder %s24, 1
      %p146 = por %p144, %p145
      %p147 = scmp.ne.s32.totalorder %s136, %s137
      %p148 = scmp.eq.s32.totalorder %s24, 0
      %p149 = por %p147, %p148
      %p150 = scmp.ne.s32.totalorder %s136, %s137
      %p151 = scmp.eq.s32.totalorder %s25, 1
      %p152 = por %p150, %p151
      %p154 = scmp.ne.s32.totalorder %s137, %s153
      %p155 = scmp.eq.s32.totalorder %s25, 0
      %p156 = por %p154, %p155
      %p157 = scmp.le.s32.totalorder 1, %s19
      %p158 = scmp.lt.s32.totalorder %s19, 3
      %p159 = pnand %p157, %p158
      %p160 = pneg %p159
      // Predicated region
      $region9: #{tpu_custom_call.1} parent=5 // pred_check
        _
      $region10: #{tpu_custom_call.1} parent=5 // pred_check_branch
        %162 = sbr.rel (%p159) target = $region12
      $region11: #{tpu_custom_call.1} parent=5 // pred_region
        %s163 = ssub.s32 %s19, 1
      $region12: #{tpu_custom_call.1} parent=5 // pred_fallthru
        _
      %p164 = scmp.lt.s32.totalorder %s19, 2
      // Predicated region
      $region13: #{tpu_custom_call.1} parent=5 // pred_check
        %p165 = pneg %p164
      $region14: #{tpu_custom_call.1} parent=5 // pred_check_branch
        %167 = sbr.rel (%p165) target = $region16
      $region15: #{tpu_custom_call.1} parent=5 // pred_region
        // Predicated region
        $region17: #{tpu_custom_call.1} parent=15 // pred_check
          %p168 = pneg %p39
        $region18: #{tpu_custom_call.1} parent=15 // pred_check_branch
          %170 = sbr.rel (%p168) target = $region20
        $region19: #{tpu_custom_call.1} parent=15 // pred_region
          %s171 = smul.u32 8, %s19
          %p172 = scmp.lt.s32.totalorder %s171, 15
          %s173 = scalar_select %p172, %s171, 15
          %s174 = scalar_lea.vmem %s0, %s173
          %s175 = smul.u32 8, %s19
        $region20: #{tpu_custom_call.1} parent=15 // pred_fallthru
          _
        // Predicated region
        $region21: #{tpu_custom_call.1} parent=15 // pred_check
          %p176 = pneg %p65
        $region22: #{tpu_custom_call.1} parent=15 // pred_check_branch
          %178 = sbr.rel (%p176) target = $region24
        $region23: #{tpu_custom_call.1} parent=15 // pred_region
          %s179 = sand.u32 %s55, 1
          %s180 = scalar_lea.sflag [#allocation3], %s179
          %s181 = sand.u32 %s55, 1
          %s182 = smul.addr %s181, 16
          %s183 = scalar_lea.vmem [#allocation2], %s182
          %s184 = smul.u32 8, %s19
          %s186 = ssub.s32 256, 256
          %187 = vsyncadd %s180, %s186
          %s188 = smul.addr %s184, 32
          %s189 = scalar_lea.hbm %s1, %s188
          %s190 = sshll.u32 %s183, 4
          %s191 = int_to_ptr.vmem [resolvable:$true] %s190
          %196 = dma.hbm_to_vmem [thread:$0]  %s189, 256, %s191, %s180, 32, 32, 2
        $region24: #{tpu_custom_call.1} parent=15 // pred_fallthru
          _
        // Predicated region
        $region25: #{tpu_custom_call.1} parent=15 // pred_check
          %p197 = pneg %p91
        $region26: #{tpu_custom_call.1} parent=15 // pred_check_branch
          %199 = sbr.rel (%p197) target = $region28
        $region27: #{tpu_custom_call.1} parent=15 // pred_region
          %s200 = sand.u32 %s81, 1
          %s201 = scalar_lea.sflag [#allocation6], %s200
          %s202 = sand.u32 %s81, 1
          %s203 = smul.addr %s202, 64
          %s204 = scalar_lea.vmem [#allocation5], %s203
          %s205 = smul.u32 8, %s19
          %s207 = ssub.s32 1024, 1024
          %208 = vsyncadd %s201, %s207
          %s209 = smul.addr %s205, 128
          %s210 = scalar_lea.hbm %s2, %s209
          %s211 = sshll.u32 %s204, 4
          %s212 = int_to_ptr.vmem [resolvable:$true] %s211
          %217 = dma.hbm_to_vmem [thread:$0]  %s210, 1024, %s212, %s201, 128, 128, 8
        $region28: #{tpu_custom_call.1} parent=15 // pred_fallthru
          _
        // Predicated region
        $region29: #{tpu_custom_call.1} parent=15 // pred_check
          %p218 = pneg %p117
        $region30: #{tpu_custom_call.1} parent=15 // pred_check_branch
          %220 = sbr.rel (%p218) target = $region32
        $region31: #{tpu_custom_call.1} parent=15 // pred_region
          %p221 = scmp.lt.s32.totalorder %s19, 1
          %s222 = scalar_select %p221, %s19, 1
          %s223 = smul.addr %s222, 8
          %s224 = scalar_lea.vmem %s3, %s223
        $region32: #{tpu_custom_call.1} parent=15 // pred_fallthru
          _
      $region16: #{tpu_custom_call.1} parent=5 // pred_fallthru
        _
      %p225 = scmp.le.s32.totalorder 1, %s19
      %p226 = scmp.lt.s32.totalorder %s19, 3
      %p227 = pnand %p225, %p226
      %p228 = pneg %p227
      // Predicated region
      $region33: #{tpu_custom_call.1} parent=5 // pred_check
        _
      $region34: #{tpu_custom_call.1} parent=5 // pred_check_branch
        %230 = sbr.rel (%p227) target = $region36
      $region35: #{tpu_custom_call.1} parent=5 // pred_region
        %s231 = ssub.s32 %s19, 1
        %s232 = sand.u32 %s58, 1
        %s233 = scalar_lea.sflag [#allocation3], %s232
        %s234 = sand.u32 %s58, 1
        %s235 = smul.addr %s234, 16
        %s236 = scalar_lea.vmem [#allocation2], %s235
        // Predicated region
        $region37: #{tpu_custom_call.1} parent=35 // pred_check
          %p237 = pneg %p71
        $region38: #{tpu_custom_call.1} parent=35 // pred_check_branch
          %239 = sbr.rel (%p237) target = $region40
        $region39: #{tpu_custom_call.1} parent=35 // pred_region
          %240 = dma.done %s233, 256
        $region40: #{tpu_custom_call.1} parent=35 // pred_fallthru
          _
        %s241 = sand.u32 %s84, 1
        %s242 = scalar_lea.sflag [#allocation6], %s241
        %s243 = sand.u32 %s84, 1
        %s244 = smul.addr %s243, 64
        %s245 = scalar_lea.vmem [#allocation5], %s244
        // Predicated region
        $region41: #{tpu_custom_call.1} parent=35 // pred_check
          %p246 = pneg %p97
        $region42: #{tpu_custom_call.1} parent=35 // pred_check_branch
          %248 = sbr.rel (%p246) target = $region44
        $region43: #{tpu_custom_call.1} parent=35 // pred_region
          %249 = dma.done %s242, 1024
        $region44: #{tpu_custom_call.1} parent=35 // pred_fallthru
          _
        %s250 = smul.u32 8, %s24
        %p251 = scmp.lt.s32.totalorder %s250, 15
        %s252 = scalar_select %p251, %s250, 15
        %s253 = scalar_lea.vmem %s0, %s252
        %p254 = pneg %p45
        %p255 = pneg %p42
        %s256 = sand.u32 %s58, 1
        %s257 = scalar_lea.sflag [#allocation3], %s256
        %s258 = sand.u32 %s58, 1
        %s259 = smul.addr %s258, 16
        %s260 = scalar_lea.vmem [#allocation2], %s259
        %p261 = pneg %p71
        %p262 = pneg %p68
        %s263 = sand.u32 %s84, 1
        %s264 = scalar_lea.sflag [#allocation6], %s263
        %s265 = sand.u32 %s84, 1
        %s266 = smul.addr %s265, 64
        %s267 = scalar_lea.vmem [#allocation5], %s266
        %p268 = pneg %p97
        %p269 = pneg %p94
        %p270 = scmp.lt.s32.totalorder %s24, 1
        %s271 = scalar_select %p270, %s24, 1
        %s272 = smul.addr %s271, 8
        %s273 = scalar_lea.vmem %s3, %s272
        %p274 = pneg %p123
        %p275 = pneg %p120
        %p276 = pneg %p149
        %p277 = pneg %p146
        %s278 = sand.u32 %s136, 1
        %s279 = scalar_lea.sflag [#allocation4], %s278
        %s280 = sand.u32 %s136, 1
        %s281 = smul.addr %s280, 8
        %s282 = scalar_lea.vmem [#allocation7], %s281
        %s283 = smul.u32 8, %s24
        %p284 = scmp.lt.s32.totalorder %s283, 15
        %s285 = scalar_select %p284, %s283, 15
        %s286 = scalar_lea.vmem %s0, %s285
        %s287 = smul.u32 8, %s24
        %s288 = smul.u32 8, %s24
        %s289 = smul.u32 8, %s24
        %p290 = scmp.lt.s32.totalorder %s24, 1
        %s291 = scalar_select %p290, %s24, 1
        %s292 = smul.addr %s291, 8
        %s293 = scalar_lea.vmem %s3, %s292
        %v294 = vld [vmem:[%s286] sm:$0x1]
        %v295 = vld [vmem:[%s286 + $0x1] sm:$0x1]
        %v296 = vld [vmem:[%s286 + $0x2] sm:$0x1]
        %v297 = vld [vmem:[%s286 + $0x3] sm:$0x1]
        %v298 = vld [vmem:[%s286 + $0x4] sm:$0x1]
        %v299 = vld [vmem:[%s286 + $0x5] sm:$0x1]
        %v300 = vld [vmem:[%s286 + $0x6] sm:$0x1]
        %v301 = vld [vmem:[%s286 + $0x7] sm:$0x1]
        %v302 = vld [vmem:[%s236] sm:$0x3]
        %v303 = vld [vmem:[%s236 + $0x2] sm:$0x3]
        %v304 = vld [vmem:[%s236 + $0x4] sm:$0x3]
        %v305 = vld [vmem:[%s236 + $0x6] sm:$0x3]
        %v306 = vld [vmem:[%s236 + $0x8] sm:$0x3]
        %v307 = vld [vmem:[%s236 + $0xa] sm:$0x3]
        %v308 = vld [vmem:[%s236 + $0xc] sm:$0x3]
        %v309 = vld [vmem:[%s236 + $0xe] sm:$0x3]
        %v310 = vld [vmem:[%s245] sm:$0xff]
        %v311 = vld [vmem:[%s245 + $0x8] sm:$0xff]
        %v312 = vld [vmem:[%s245 + $0x10] sm:$0xff]
        %v313 = vld [vmem:[%s245 + $0x18] sm:$0xff]
        %v314 = vld [vmem:[%s245 + $0x20] sm:$0xff]
        %v315 = vld [vmem:[%s245 + $0x28] sm:$0xff]
        %v316 = vld [vmem:[%s245 + $0x30] sm:$0xff]
        %v317 = vld [vmem:[%s245 + $0x38] sm:$0xff]
        %v318 = vld [vmem:[%s293] sm:$0xff]
        %v327 = vlaneseq
        %v328 = vshrl.u32 %v327, 7
        %v329 = vsub.s32 0, %v328
        %v330 = vrot.slane %v294, %v329
        %v331 = vlaneseq
        %v332 = vshrl.u32 %v331, 7
        %v333 = vsub.s32 0, %v332
        %v334 = vrot.slane %v295, %v333
        %v335 = vlaneseq
        %v336 = vshrl.u32 %v335, 7
        %v337 = vsub.s32 0, %v336
        %v338 = vrot.slane %v296, %v337
        %v339 = vlaneseq
        %v340 = vshrl.u32 %v339, 7
        %v341 = vsub.s32 0, %v340
        %v342 = vrot.slane %v297, %v341
        %v343 = vlaneseq
        %v344 = vshrl.u32 %v343, 7
        %v345 = vsub.s32 0, %v344
        %v346 = vrot.slane %v298, %v345
        %v347 = vlaneseq
        %v348 = vshrl.u32 %v347, 7
        %v349 = vsub.s32 0, %v348
        %v350 = vrot.slane %v299, %v349
        %v351 = vlaneseq
        %v352 = vshrl.u32 %v351, 7
        %v353 = vsub.s32 0, %v352
        %v354 = vrot.slane %v300, %v353
        %v355 = vlaneseq
        %v356 = vshrl.u32 %v355, 7
        %v357 = vsub.s32 0, %v356
        %v358 = vrot.slane %v301, %v357
        %v367 = vmul.f32 %v330, %v302
        %v368 = vmul.f32 %v334, %v303
        %v369 = vmul.f32 %v338, %v304
        %v370 = vmul.f32 %v342, %v305
        %v371 = vmul.f32 %v346, %v306
        %v372 = vmul.f32 %v350, %v307
        %v373 = vmul.f32 %v354, %v308
        %v374 = vmul.f32 %v358, %v309
        %vm375 = vcmask 254976
        %v376 = vsel %vm375, %v367, 0.0
        %377 = vadd.xlane.f32.xlu0 %v376
        %v378 = vpop.xlane.xlu0 %377
        %v379 = vsel %vm375, %v368, 0.0
        %380 = vadd.xlane.f32.xlu0 %v379
        %v381 = vpop.xlane.xlu0 %380
        %v382 = vsel %vm375, %v369, 0.0
        %383 = vadd.xlane.f32.xlu0 %v382
        %v384 = vpop.xlane.xlu0 %383
        %v385 = vsel %vm375, %v370, 0.0
        %386 = vadd.xlane.f32.xlu0 %v385
        %v387 = vpop.xlane.xlu0 %386
        %v388 = vsel %vm375, %v371, 0.0
        %389 = vadd.xlane.f32.xlu0 %v388
        %v390 = vpop.xlane.xlu0 %389
        %v391 = vsel %vm375, %v372, 0.0
        %392 = vadd.xlane.f32.xlu0 %v391
        %v393 = vpop.xlane.xlu0 %392
        %v394 = vsel %vm375, %v373, 0.0
        %395 = vadd.xlane.f32.xlu0 %v394
        %v396 = vpop.xlane.xlu0 %395
        %v397 = vsel %vm375, %v374, 0.0
        %398 = vadd.xlane.f32.xlu0 %v397
        %v399 = vpop.xlane.xlu0 %398
        %v400 = vmul.f32 %v330, %v310
        %v401 = vmul.f32 %v334, %v311
        %v402 = vmul.f32 %v338, %v312
        %v403 = vmul.f32 %v342, %v313
        %v404 = vmul.f32 %v346, %v314
        %v405 = vmul.f32 %v350, %v315
        %v406 = vmul.f32 %v354, %v316
        %v407 = vmul.f32 %v358, %v317
        %vm408 = vcmask 261120
        %v409 = vsel %vm408, %v400, 0.0
        %410 = vadd.xlane.f32.xlu0 %v409
        %v411 = vpop.xlane.xlu0 %410
        %v412 = vsel %vm408, %v401, 0.0
        %413 = vadd.xlane.f32.xlu0 %v412
        %v414 = vpop.xlane.xlu0 %413
        %v415 = vsel %vm408, %v402, 0.0
        %416 = vadd.xlane.f32.xlu0 %v415
        %v417 = vpop.xlane.xlu0 %416
        %v418 = vsel %vm408, %v403, 0.0
        %419 = vadd.xlane.f32.xlu0 %v418
        %v420 = vpop.xlane.xlu0 %419
        %v421 = vsel %vm408, %v404, 0.0
        %422 = vadd.xlane.f32.xlu0 %v421
        %v423 = vpop.xlane.xlu0 %422
        %v424 = vsel %vm408, %v405, 0.0
        %425 = vadd.xlane.f32.xlu0 %v424
        %v426 = vpop.xlane.xlu0 %425
        %v427 = vsel %vm408, %v406, 0.0
        %428 = vadd.xlane.f32.xlu0 %v427
        %v429 = vpop.xlane.xlu0 %428
        %v430 = vsel %vm408, %v407, 0.0
        %431 = vadd.xlane.f32.xlu0 %v430
        %v432 = vpop.xlane.xlu0 %431
        %v433 = vsub.f32 1.0, %v378
        %v434 = vsub.f32 1.0, %v381
        %v435 = vsub.f32 1.0, %v384
        %v436 = vsub.f32 1.0, %v387
        %v437 = vsub.f32 1.0, %v390
        %v438 = vsub.f32 1.0, %v393
        %v439 = vsub.f32 1.0, %v396
        %v440 = vsub.f32 1.0, %v399
        %v449 = vlaneseq
        %v450 = vand.u32 %v449, 127
        %v451 = vlaneseq
        %v452 = vshrl.u32 %v451, 7
        %v453 = vsub.s32 %v450, %v452
        %v454 = vrot.slane %v433, %v453
        %v455 = vlaneseq
        %v456 = vshrl.u32 %v455, 7
        %v457 = vsub.s32 %v450, %v456
        %v458 = vrot.slane %v434, %v457
        %v459 = vlaneseq
        %v460 = vshrl.u32 %v459, 7
        %v461 = vsub.s32 %v450, %v460
        %v462 = vrot.slane %v435, %v461
        %v463 = vlaneseq
        %v464 = vshrl.u32 %v463, 7
        %v465 = vsub.s32 %v450, %v464
        %v466 = vrot.slane %v436, %v465
        %v467 = vlaneseq
        %v468 = vshrl.u32 %v467, 7
        %v469 = vsub.s32 %v450, %v468
        %v470 = vrot.slane %v437, %v469
        %v471 = vlaneseq
        %v472 = vshrl.u32 %v471, 7
        %v473 = vsub.s32 %v450, %v472
        %v474 = vrot.slane %v438, %v473
        %v475 = vlaneseq
        %v476 = vshrl.u32 %v475, 7
        %v477 = vsub.s32 %v450, %v476
        %v478 = vrot.slane %v439, %v477
        %v479 = vlaneseq
        %v480 = vshrl.u32 %v479, 7
        %v481 = vsub.s32 %v450, %v480
        %v482 = vrot.slane %v440, %v481
        %vm483 = vcmask 1041409
        %v484 = vsel %vm483, %v458, %v454
        %vm485 = vcmask 1042434
        %v486 = vsel %vm485, %v462, %v484
        %vm487 = vcmask 1043459
        %v488 = vsel %vm487, %v466, %v486
        %vm489 = vcmask 1044484
        %v490 = vsel %vm489, %v470, %v488
        %vm491 = vcmask 1045509
        %v492 = vsel %vm491, %v474, %v490
        %vm493 = vcmask 1046534
        %v494 = vsel %vm493, %v478, %v492
        %vm495 = vcmask 1047559
        %v496 = vsel %vm495, %v482, %v494
        %vm498 = vcmask 15360
        %v499 = vsel %vm498, %v496, 0.0
        %500 = vadd.xlane.f32.xlu0 %v499
        %v501 = vpop.xlane.xlu0 %500
        %v502 = vrcp.pop 2.0
        %v503 = vmul.f32 %v501, %v502
        %vm504 = vcmp.gt.f32.partialorder %v411, 0.2
        %vm505 = vcmp.gt.f32.partialorder %v414, 0.2
        %vm506 = vcmp.gt.f32.partialorder %v417, 0.2
        %vm507 = vcmp.gt.f32.partialorder %v420, 0.2
        %vm508 = vcmp.gt.f32.partialorder %v423, 0.2
        %vm509 = vcmp.gt.f32.partialorder %v426, 0.2
        %vm510 = vcmp.gt.f32.partialorder %v429, 0.2
        %vm511 = vcmp.gt.f32.partialorder %v432, 0.2
        %v512 = vsel %vm504, 1, 0
        %v513 = vsel %vm505, 1, 0
        %v514 = vsel %vm506, 1, 0
        %v515 = vsel %vm507, 1, 0
        %v516 = vsel %vm508, 1, 0
        %v517 = vsel %vm509, 1, 0
        %v518 = vsel %vm510, 1, 0
        %v519 = vsel %vm511, 1, 0
        %v520 = vcvt.s32.f32 %v512
        %v521 = vcvt.s32.f32 %v513
        %v522 = vcvt.s32.f32 %v514
        %v523 = vcvt.s32.f32 %v515
        %v524 = vcvt.s32.f32 %v516
        %v525 = vcvt.s32.f32 %v517
        %v526 = vcvt.s32.f32 %v518
        %v527 = vcvt.s32.f32 %v519
        %v529 = vlaneseq
        %v530 = vshrl.u32 %v529, 7
        %v531 = vsub.s32 0, %v530
        %v532 = vrot.slane %v318, %v531
        %534 = vbcast.lane.b32.xlu0 %v532, 256
        %v535 = vpop.permute.xlu0 %534
        %v536 = vlaneseq
        %v537 = vshrl.u32 %v536, 7
        %v538 = vsub.s32 1, %v537
        %v539 = vrot.slane %v318, %v538
        %541 = vbcast.lane.b32.xlu0 %v539, 256
        %v542 = vpop.permute.xlu0 %541
        %v543 = vlaneseq
        %v544 = vshrl.u32 %v543, 7
        %v545 = vsub.s32 2, %v544
        %v546 = vrot.slane %v318, %v545
        %548 = vbcast.lane.b32.xlu0 %v546, 256
        %v549 = vpop.permute.xlu0 %548
        %v550 = vlaneseq
        %v551 = vshrl.u32 %v550, 7
        %v552 = vsub.s32 3, %v551
        %v553 = vrot.slane %v318, %v552
        %555 = vbcast.lane.b32.xlu0 %v553, 256
        %v556 = vpop.permute.xlu0 %555
        %v557 = vlaneseq
        %v558 = vshrl.u32 %v557, 7
        %v559 = vsub.s32 4, %v558
        %v560 = vrot.slane %v318, %v559
        %562 = vbcast.lane.b32.xlu0 %v560, 256
        %v563 = vpop.permute.xlu0 %562
        %v564 = vlaneseq
        %v565 = vshrl.u32 %v564, 7
        %v566 = vsub.s32 5, %v565
        %v567 = vrot.slane %v318, %v566
        %569 = vbcast.lane.b32.xlu0 %v567, 256
        %v570 = vpop.permute.xlu0 %569
        %v571 = vlaneseq
        %v572 = vshrl.u32 %v571, 7
        %v573 = vsub.s32 6, %v572
        %v574 = vrot.slane %v318, %v573
        %576 = vbcast.lane.b32.xlu0 %v574, 256
        %v577 = vpop.permute.xlu0 %576
        %v578 = vlaneseq
        %v579 = vshrl.u32 %v578, 7
        %v580 = vsub.s32 7, %v579
        %v581 = vrot.slane %v318, %v580
        %583 = vbcast.lane.b32.xlu0 %v581, 256
        %v584 = vpop.permute.xlu0 %583
        %v593 = vmul.f32 %v411, %v535
        %v594 = vmul.f32 %v414, %v542
        %v595 = vmul.f32 %v417, %v549
        %v596 = vmul.f32 %v420, %v556
        %v597 = vmul.f32 %v423, %v563
        %v598 = vmul.f32 %v426, %v570
        %v599 = vmul.f32 %v429, %v577
        %v600 = vmul.f32 %v432, %v584
        %v601 = vmul.f32 %v593, %v520
        %v602 = vmul.f32 %v594, %v521
        %v603 = vmul.f32 %v595, %v522
        %v604 = vmul.f32 %v596, %v523
        %v605 = vmul.f32 %v597, %v524
        %v606 = vmul.f32 %v598, %v525
        %v607 = vmul.f32 %v599, %v526
        %v608 = vmul.f32 %v600, %v527
        %617 = vset.pattern.permute.xlu0 0
        %618 = vperm.xlu0 %617, %v601
        %v619 = vpop.permute.xlu0 %618
        %620 = vset.pattern.permute.xlu0 0
        %621 = vperm.xlu0 %620, %v602
        %v622 = vpop.permute.xlu0 %621
        %623 = vset.pattern.permute.xlu0 0
        %624 = vperm.xlu0 %623, %v603
        %v625 = vpop.permute.xlu0 %624
        %626 = vset.pattern.permute.xlu0 0
        %627 = vperm.xlu0 %626, %v604
        %v628 = vpop.permute.xlu0 %627
        %629 = vset.pattern.permute.xlu0 0
        %630 = vperm.xlu0 %629, %v605
        %v631 = vpop.permute.xlu0 %630
        %632 = vset.pattern.permute.xlu0 0
        %633 = vperm.xlu0 %632, %v606
        %v634 = vpop.permute.xlu0 %633
        %635 = vset.pattern.permute.xlu0 0
        %636 = vperm.xlu0 %635, %v607
        %v637 = vpop.permute.xlu0 %636
        %638 = vset.pattern.permute.xlu0 0
        %639 = vperm.xlu0 %638, %v608
        %v640 = vpop.permute.xlu0 %639
        %v641 = vlaneseq
        %v642 = vshrl.u32 %v641, 7
        %v643 = vsub.s32 %v450, %v642
        %v644 = vrot.slane %v619, %v643
        %v645 = vlaneseq
        %v646 = vshrl.u32 %v645, 7
        %v647 = vsub.s32 %v450, %v646
        %v648 = vrot.slane %v622, %v647
        %v649 = vlaneseq
        %v650 = vshrl.u32 %v649, 7
        %v651 = vsub.s32 %v450, %v650
        %v652 = vrot.slane %v625, %v651
        %v653 = vlaneseq
        %v654 = vshrl.u32 %v653, 7
        %v655 = vsub.s32 %v450, %v654
        %v656 = vrot.slane %v628, %v655
        %v657 = vlaneseq
        %v658 = vshrl.u32 %v657, 7
        %v659 = vsub.s32 %v450, %v658
        %v660 = vrot.slane %v631, %v659
        %v661 = vlaneseq
        %v662 = vshrl.u32 %v661, 7
        %v663 = vsub.s32 %v450, %v662
        %v664 = vrot.slane %v634, %v663
        %v665 = vlaneseq
        %v666 = vshrl.u32 %v665, 7
        %v667 = vsub.s32 %v450, %v666
        %v668 = vrot.slane %v637, %v667
        %v669 = vlaneseq
        %v670 = vshrl.u32 %v669, 7
        %v671 = vsub.s32 %v450, %v670
        %v672 = vrot.slane %v640, %v671
        %v673 = vsel %vm483, %v648, %v644
        %v674 = vsel %vm485, %v652, %v673
        %v675 = vsel %vm487, %v656, %v674
        %v676 = vsel %vm489, %v660, %v675
        %v677 = vsel %vm491, %v664, %v676
        %v678 = vsel %vm493, %v668, %v677
        %v679 = vsel %vm495, %v672, %v678
        %vm681 = vcmask 64512
        %v682 = vsel %vm681, %v679, 0.0
        %683 = vadd.xlane.f32.xlu0 %v682
        %v684 = vpop.xlane.xlu0 %683
        %v693 = vlaneseq
        %v694 = vshrl.u32 %v693, 7
        %v695 = vsub.s32 %v450, %v694
        %v696 = vrot.slane %v520, %v695
        %v697 = vlaneseq
        %v698 = vshrl.u32 %v697, 7
        %v699 = vsub.s32 %v450, %v698
        %v700 = vrot.slane %v521, %v699
        %v701 = vlaneseq
        %v702 = vshrl.u32 %v701, 7
        %v703 = vsub.s32 %v450, %v702
        %v704 = vrot.slane %v522, %v703
        %v705 = vlaneseq
        %v706 = vshrl.u32 %v705, 7
        %v707 = vsub.s32 %v450, %v706
        %v708 = vrot.slane %v523, %v707
        %v709 = vlaneseq
        %v710 = vshrl.u32 %v709, 7
        %v711 = vsub.s32 %v450, %v710
        %v712 = vrot.slane %v524, %v711
        %v713 = vlaneseq
        %v714 = vshrl.u32 %v713, 7
        %v715 = vsub.s32 %v450, %v714
        %v716 = vrot.slane %v525, %v715
        %v717 = vlaneseq
        %v718 = vshrl.u32 %v717, 7
        %v719 = vsub.s32 %v450, %v718
        %v720 = vrot.slane %v526, %v719
        %v721 = vlaneseq
        %v722 = vshrl.u32 %v721, 7
        %v723 = vsub.s32 %v450, %v722
        %v724 = vrot.slane %v527, %v723
        %v725 = vsel %vm483, %v700, %v696
        %v726 = vsel %vm485, %v704, %v725
        %v727 = vsel %vm487, %v708, %v726
        %v728 = vsel %vm489, %v712, %v727
        %v729 = vsel %vm491, %v716, %v728
        %v730 = vsel %vm493, %v720, %v729
        %v731 = vsel %vm495, %v724, %v730
        %v733 = vmul.f32 %v318, %v731
        %v734 = vadd.f32 %v733, 1e-05
        %v735 = vsel %vm681, %v734, 0.0
        %736 = vadd.xlane.f32.xlu0 %v735
        %v737 = vpop.xlane.xlu0 %736
        %v738 = vrcp.pop %v737
        %v739 = vmul.f32 %v684, %v738
        %v740 = vadd.f32 %v503, %v739
        %vm741 = vcmp.gt.f32.partialorder %v318, 0.0
        %v750 = vlaneseq
        %v751 = vshrl.u32 %v750, 7
        %v752 = vsub.s32 %v450, %v751
        %v753 = vrot.slane %v411, %v752
        %v754 = vlaneseq
        %v755 = vshrl.u32 %v754, 7
        %v756 = vsub.s32 %v450, %v755
        %v757 = vrot.slane %v414, %v756
        %v758 = vlaneseq
        %v759 = vshrl.u32 %v758, 7
        %v760 = vsub.s32 %v450, %v759
        %v761 = vrot.slane %v417, %v760
        %v762 = vlaneseq
        %v763 = vshrl.u32 %v762, 7
        %v764 = vsub.s32 %v450, %v763
        %v765 = vrot.slane %v420, %v764
        %v766 = vlaneseq
        %v767 = vshrl.u32 %v766, 7
        %v768 = vsub.s32 %v450, %v767
        %v769 = vrot.slane %v423, %v768
        %v770 = vlaneseq
        %v771 = vshrl.u32 %v770, 7
        %v772 = vsub.s32 %v450, %v771
        %v773 = vrot.slane %v426, %v772
        %v774 = vlaneseq
        %v775 = vshrl.u32 %v774, 7
        %v776 = vsub.s32 %v450, %v775
        %v777 = vrot.slane %v429, %v776
        %v778 = vlaneseq
        %v779 = vshrl.u32 %v778, 7
        %v780 = vsub.s32 %v450, %v779
        %v781 = vrot.slane %v432, %v780
        %v782 = vsel %vm483, %v757, %v753
        %v783 = vsel %vm485, %v761, %v782
        %v784 = vsel %vm487, %v765, %v783
        %v785 = vsel %vm489, %v769, %v784
        %v786 = vsel %vm491, %v773, %v785
        %v787 = vsel %vm493, %v777, %v786
        %v788 = vsel %vm495, %v781, %v787
        %v790 = vsel %vm741, %v788, -1000.0
        %v799 = vlaneseq
        %v800 = vshrl.u32 %v799, 7
        %v801 = vsub.s32 %v450, %v800
        %v802 = vrot.slane %v378, %v801
        %v803 = vlaneseq
        %v804 = vshrl.u32 %v803, 7
        %v805 = vsub.s32 %v450, %v804
        %v806 = vrot.slane %v381, %v805
        %v807 = vlaneseq
        %v808 = vshrl.u32 %v807, 7
        %v809 = vsub.s32 %v450, %v808
        %v810 = vrot.slane %v384, %v809
        %v811 = vlaneseq
        %v812 = vshrl.u32 %v811, 7
        %v813 = vsub.s32 %v450, %v812
        %v814 = vrot.slane %v387, %v813
        %v815 = vlaneseq
        %v816 = vshrl.u32 %v815, 7
        %v817 = vsub.s32 %v450, %v816
        %v818 = vrot.slane %v390, %v817
        %v819 = vlaneseq
        %v820 = vshrl.u32 %v819, 7
        %v821 = vsub.s32 %v450, %v820
        %v822 = vrot.slane %v393, %v821
        %v823 = vlaneseq
        %v824 = vshrl.u32 %v823, 7
        %v825 = vsub.s32 %v450, %v824
        %v826 = vrot.slane %v396, %v825
        %v827 = vlaneseq
        %v828 = vshrl.u32 %v827, 7
        %v829 = vsub.s32 %v450, %v828
        %v830 = vrot.slane %v399, %v829
        %v831 = vsel %vm483, %v806, %v802
        %v832 = vsel %vm485, %v810, %v831
        %v833 = vsel %vm487, %v814, %v832
        %v834 = vsel %vm489, %v818, %v833
        %v835 = vsel %vm491, %v822, %v834
        %v836 = vsel %vm493, %v826, %v835
        %v837 = vsel %vm495, %v830, %v836
        %v839 = vsel %vm498, %v837, -inf
        %840 = vmax.xlane.f32.xlu0 %v839
        %v841 = vpop.xlane.xlu0 %840
        %v842 = vsub.f32 1.0, %v841
        %v843 = vmul.f32 %v842, 0.5
        %v844 = vsel %vm681, %v790, -inf
        %845 = vmax.xlane.f32.xlu0 %v844
        %v846 = vpop.xlane.xlu0 %845
        %v847 = vsub.f32 1.0, %v846
        %v848 = vmul.f32 %v847, 0.5
        %vm849 = vcmp.lt.f32.partialorder %v843, %v848
        %v850 = vsel %vm849, %v843, %v848
        %v851 = vadd.f32 %v850, 1e-05
        %vm852 = vcmp.gt.f32.partialorder %v851, 0.1
        %v853 = vsel %vm852, 1.0, %v851
        %v854 = vlog2.pop %v853
        %v855 = vmul.f32 %v854, 0.6931472
        %v856 = vsub.f32 0.0, %v855
        %v857 = vrot.slane %v740, 4
        %v858 = vadd.f32 %v740, %v857
        %v859 = vrot.slane %v858, 2
        %v860 = vadd.f32 %v858, %v859
        %v861 = vrot.slane %v860, 1
        %v862 = vadd.f32 %v860, %v861
        %v863 = vrot.slane %v856, 4
        %v864 = vadd.f32 %v856, %v863
        %v865 = vrot.slane %v864, 2
        %v866 = vadd.f32 %v864, %v865
        %v867 = vrot.slane %v866, 1
        %v868 = vadd.f32 %v866, %v867
        %vm869 = vcmp.eq.s32.totalorder %v450, 0
        %vm870 = vcmp.eq.s32.totalorder %v450, 1
        %v871 = vsel %vm870, %v868, 0.0
        %v872 = vsel %vm869, %v862, %v871
        %873 = vst [vmem:[%s282] sm:$0xff] %v872
        %s874 = sand.u32 %s136, 1
        %s875 = scalar_lea.sflag [#allocation4], %s874
        %s876 = sand.u32 %s136, 1
        %s877 = smul.addr %s876, 8
        %s878 = scalar_lea.vmem [#allocation7], %s877
        // Predicated region
        $region45: #{tpu_custom_call.1} parent=35 // pred_check
          %p879 = pneg %p146
        $region46: #{tpu_custom_call.1} parent=35 // pred_check_branch
          %881 = sbr.rel (%p879) target = $region48
        $region47: #{tpu_custom_call.1} parent=35 // pred_region
          %s883 = ssub.s32 128, 128
          %884 = vsyncadd %s875, %s883
          %s885 = smul.addr %s24, 128
          %s886 = scalar_lea.hbm %s4, %s885
          %s888 = sshll.u32 %s878, 4
          %s889 = int_to_ptr.vmem [resolvable:$true] %s888
          %891 = dma.vmem_to_hbm [thread:$0]  %s889, 128, %s886, %s875
        $region48: #{tpu_custom_call.1} parent=35 // pred_fallthru
          _
      $region36: #{tpu_custom_call.1} parent=5 // pred_fallthru
        _
      %p892 = scmp.le.s32.totalorder 2, %s19
      // Predicated region
      $region49: #{tpu_custom_call.1} parent=5 // pred_check
        %p893 = pneg %p892
      $region50: #{tpu_custom_call.1} parent=5 // pred_check_branch
        %895 = sbr.rel (%p893) target = $region52
      $region51: #{tpu_custom_call.1} parent=5 // pred_region
        %s896 = ssub.s32 %s19, 2
        // Predicated region
        $region53: #{tpu_custom_call.1} parent=51 // pred_check
          %p897 = pneg %p152
        $region54: #{tpu_custom_call.1} parent=51 // pred_check_branch
          %899 = sbr.rel (%p897) target = $region56
        $region55: #{tpu_custom_call.1} parent=51 // pred_region
          %s900 = sand.u32 %s137, 1
          %s901 = scalar_lea.sflag [#allocation4], %s900
          %s902 = sand.u32 %s137, 1
          %s903 = smul.addr %s902, 8
          %s904 = scalar_lea.vmem [#allocation7], %s903
          %905 = dma.done %s901, 128
        $region56: #{tpu_custom_call.1} parent=51 // pred_fallthru
          _
      $region52: #{tpu_custom_call.1} parent=5 // pred_fallthru
        _
    $region6: #{tpu_custom_call.1} parent=1 // loop_footer
      %s23 = sadd.s32 1, %s19
    $region7: #{tpu_custom_call.1} parent=1 // loop_footer_branch
      %18 = sbr.rel target = $region3
    $region8: #{tpu_custom_call.1} parent=1 // loop_exit
      _
    %906 = vsyncpa [#allocation3], 1
    %s907 = scalar_lea.sflag [#allocation3], 1
    %908 = vsyncpa %s907, 1
    %909 = vsyncpa [#allocation6], 1
    %s910 = scalar_lea.sflag [#allocation6], 1
    %911 = vsyncpa %s910, 1
    %912 = vsyncpa [#allocation4], 1
    %s913 = scalar_lea.sflag [#allocation4], 1
    %914 = vsyncpa %s913, 1

</llo_original>
